<compile_context>
chip_gen: v7x
topology: tpu7x:2x2x1
jax: 0.10.0
libtpu: 0.0.40
codegen_flags: <defaults>
</compile_context>

<pallas_src>
import jax
import jax.numpy as jnp
from jax import lax
from jax.experimental import pallas as pl
from jax.experimental.pallas import tpu as pltpu

# ------------------------- model configuration -------------------------
VOCAB_SIZES = [31, 1428, 4, 5, 3, 5, 4, 10, 4]
EMB_DIMS    = [2, 2, 2, 2, 2, 2, 2, 3, 2]          # sum = 19
N_CAT       = 9
N_CLASSES   = 3
W_PRIOR_SIGMA    = 0.5        # linear_w_prior_sigma
B_PRIOR_SIGMA    = 5.0        # linear_bias_prior_sigma
INIT_SIGMA_SCALE = 1e-4       # initPriorSigmaScale

PAD      = 128                # lane padding for all feature / hidden dims
BIAS_ROW = PAD - 1            # sampled bias lives here; activations carry 1.0 here
N_LAYERS = 6


def _round_up(x, m):
    return (x + m - 1) // m * m


# ------------------------------ kernels ---------------------------------
def _mlp_body(x_ref, out_ref, sampled_weight):
    """6x (full 128x128 MXU matmul, bias folded in) + ReLU, masked log_softmax."""
    h = x_ref[...]                                        # [TB, 128] f32
    for li in range(N_LAYERS):
        w = sampled_weight(li).astype(jnp.bfloat16)       # [128, 128] bf16
        h = jnp.dot(h.astype(jnp.bfloat16), w,
                    preferred_element_type=jnp.float32)   # f32 accumulate
        if li < N_LAYERS - 1:
            h = jnp.maximum(h, 0.0)                       # ReLU (keeps carry 1.0)
    # mask padded lanes, then stable log_softmax over the 3 real classes
    lane = lax.broadcasted_iota(jnp.int32, h.shape, 1)
    h = jnp.where(lane < N_CLASSES, h, -1e30)
    m = jnp.max(h, axis=-1, keepdims=True)
    s = h - m
    lse = jnp.log(jnp.sum(jnp.exp(s), axis=-1, keepdims=True))
    out_ref[...] = s - lse


def bnn_kernel_stochastic(x_ref, mean_ref, sigma_ref, noise_ref, out_ref):
    # variational sampling fused in f32: W = mean + sigma * eps
    _mlp_body(x_ref, out_ref,
              lambda li: mean_ref[li] + sigma_ref[li] * noise_ref[li])


def bnn_kernel_deterministic(x_ref, mean_ref, out_ref):
    # stochastic=False path: W = mean (no noise DMA, no FMA)
    _mlp_body(x_ref, out_ref, lambda li: mean_ref[li])


# ------------------------------ params ----------------------------------
def init_params(key, in_features):
    """Parameter init mirroring the PyTorch __init__, packed into lane-dense slabs."""
    feat_in = in_features - N_CAT + sum(EMB_DIMS)                 # 48
    dims = [feat_in, 16, 32, 32, 32, 16, N_CLASSES]
    assert max(dims) <= BIAS_ROW

    keys = jax.random.split(key, N_CAT + 2 * N_LAYERS)
    # nn.Embedding default init: N(0, 1)
    embeddings = [
        jax.random.normal(keys[i], (VOCAB_SIZES[i], EMB_DIMS[i]), jnp.float32)
        for i in range(N_CAT)
    ]

    # sigma = exp(log(scale * prior_sigma)) precomputed (constant per tensor)
    w_sigma = INIT_SIGMA_SCALE * W_PRIOR_SIGMA
    b_sigma = INIT_SIGMA_SCALE * B_PRIOR_SIGMA

    mean_stack  = jnp.zeros((N_LAYERS, PAD, PAD), jnp.float32)
    sigma_stack = jnp.zeros((N_LAYERS, PAD, PAD), jnp.float32)
    kidx = N_CAT
    for li in range(N_LAYERS):
        fan_in, fan_out = dims[li], dims[li + 1]
        kw, kb = keys[kidx], keys[kidx + 1]
        kidx += 2
        # torch.rand(out, in) - 0.5, stored pre-transposed as [in, out]
        w_mean = (jax.random.uniform(kw, (fan_out, fan_in), jnp.float32) - 0.5).T
        b_mean = jax.random.uniform(kb, (fan_out,), jnp.float32) - 0.5
        mean_stack  = mean_stack.at[li, :fan_in, :fan_out].set(w_mean)
        mean_stack  = mean_stack.at[li, BIAS_ROW, :fan_out].set(b_mean)
        mean_stack  = mean_stack.at[li, BIAS_ROW, BIAS_ROW].set(1.0)   # carry lane
        sigma_stack = sigma_stack.at[li, :fan_in, :fan_out].set(w_sigma)
        sigma_stack = sigma_stack.at[li, BIAS_ROW, :fan_out].set(b_sigma)
        # sigma at [BIAS_ROW, BIAS_ROW] stays 0 so noise never disturbs the carry
    return embeddings, mean_stack, sigma_stack, dims


def embed_and_pad(x, embeddings, b_pad):
    """Embedding gather + concat (plain JAX glue), zero-pad to 128 lanes,
    and set the constant 1.0 bias-carry lane."""
    batch = x.shape[0]
    idx = x[:, :N_CAT].astype(jnp.int32)
    embs = [embeddings[i][idx[:, i]] for i in range(N_CAT)]
    feats = jnp.concatenate(embs + [x[:, N_CAT:]], axis=1).astype(jnp.float32)
    xp = jnp.zeros((b_pad, PAD), jnp.float32)
    xp = xp.at[:batch, :feats.shape[1]].set(feats)
    xp = xp.at[:, BIAS_ROW].set(1.0)
    return xp


# ------------------------------ forward ---------------------------------
def richter_bnn_forward(x, embeddings, mean_stack, sigma_stack, noise_key,
                        stochastic=True, batch_tile=512):
    """Forward pass: embeddings in JAX glue, fused Bayesian MLP in one Pallas kernel."""
    batch = x.shape[0]
    tb = min(batch_tile, _round_up(batch, 8))        # f32 sublane multiple
    b_pad = _round_up(batch, tb)
    xp = embed_and_pad(x, embeddings, b_pad)

    x_spec   = pl.BlockSpec((tb, PAD), lambda i: (i, 0))
    w_spec   = pl.BlockSpec((N_LAYERS, PAD, PAD), lambda i: (0, 0, 0))
    out_spec = pl.BlockSpec((tb, PAD), lambda i: (i, 0))

    if stochastic:
        # fresh standard-normal noise per forward (Normal(0,1).sample())
        noise = jax.random.normal(noise_key, (N_LAYERS, PAD, PAD), jnp.float32)
        kernel = bnn_kernel_stochastic
        inputs = (xp, mean_stack, sigma_stack, noise)
        in_specs = [x_spec, w_spec, w_spec, w_spec]
    else:
        kernel = bnn_kernel_deterministic
        inputs = (xp, mean_stack)
        in_specs = [x_spec, w_spec]

    in_bytes = sum(int(a.size) * 4 for a in inputs)
    out_bytes = b_pad * PAD * 4
    cost = pl.CostEstimate(
        flops=2 * b_pad * PAD * PAD * N_LAYERS,
        transcendentals=b_pad * PAD,
        bytes_accessed=in_bytes + out_bytes,
    )

    out_pad = pl.pallas_call(
        kernel,
        out_shape=jax.ShapeDtypeStruct((b_pad, PAD), jnp.float32),
        grid=(b_pad // tb,),
        in_specs=in_specs,
        out_specs=out_spec,
        compiler_params=pltpu.CompilerParams(
            dimension_semantics=("parallel",)),   # batch axis shards across TCs (v7x)
        cost_estimate=cost,
    )(*inputs)
    return out_pad[:batch, :N_CLASSES]


# -------------------------------- main -----------------------------------
if __name__ == "__main__":
    IN_FEATURES = 38   # 9 categorical + 29 continuous columns
    BATCH = 8

    root = jax.random.PRNGKey(0)
    k_param, k_cat, k_cont, k_noise = jax.random.split(root, 4)

    embeddings, mean_stack, sigma_stack, dims = init_params(k_param, IN_FEATURES)

    # Build input x: first 9 cols are categorical indices stored as floats
    # (the PyTorch model casts them with .to(torch.int32)).
    cat_keys = jax.random.split(k_cat, N_CAT)
    cat_cols = [
        jax.random.randint(cat_keys[i], (BATCH, 1), 0, VOCAB_SIZES[i]).astype(jnp.float32)
        for i in range(N_CAT)
    ]
    cont = jax.random.normal(k_cont, (BATCH, IN_FEATURES - N_CAT), jnp.float32)
    x = jnp.concatenate(cat_cols + [cont], axis=1)            # [B, in_features]

    # --- stochastic forward through the Pallas kernel ---
    logp = richter_bnn_forward(x, embeddings, mean_stack, sigma_stack, k_noise,
                               stochastic=True)
    logp = jax.block_until_ready(logp)
    assert logp.shape == (BATCH, N_CLASSES)
    assert bool(jnp.all(jnp.abs(jnp.sum(jnp.exp(logp), axis=-1) - 1.0) < 1e-4))

    # --- plain-JAX reference using the identical packed math ---
    b_pad = _round_up(BATCH, 8)
    xp = embed_and_pad(x, embeddings, b_pad)
    noise = jax.random.normal(k_noise, (N_LAYERS, PAD, PAD), jnp.float32)
    h = xp
    for li in range(N_LAYERS):
        w = (mean_stack[li] + sigma_stack[li] * noise[li]).astype(jnp.bfloat16)
        h = jnp.dot(h.astype(jnp.bfloat16), w, preferred_element_type=jnp.float32)
        if li < N_LAYERS - 1:
            h = jnp.maximum(h, 0.0)
    ref = jax.nn.log_softmax(h[:BATCH, :N_CLASSES], axis=-1)
    assert bool(jnp.allclose(logp, ref, atol=1e-2)), "kernel/reference mismatch"

    # --- deterministic (no-noise) path exercises the second kernel variant ---
    logp_det = richter_bnn_forward(x, embeddings, mean_stack, sigma_stack, k_noise,
                                   stochastic=False)
    logp_det = jax.block_until_ready(logp_det)
    assert logp_det.shape == (BATCH, N_CLASSES)
    assert bool(jnp.all(jnp.abs(jnp.sum(jnp.exp(logp_det), axis=-1) - 1.0) < 1e-4))

    print("KERNEL_OK")
</pallas_src>

<mosaic_0001>
module attributes {stable_mosaic.version = 11 : i64} {
  func.func @bnn_kernel_stochastic(%arg0: i32, %arg1: memref<8x128xf32, #tpu.memory_space<vmem>>, %arg2: memref<6x128x128xf32, #tpu.memory_space<vmem>>, %arg3: memref<6x128x128xf32, #tpu.memory_space<vmem>>, %arg4: memref<6x128x128xf32, #tpu.memory_space<vmem>>, %arg5: memref<8x128xf32, #tpu.memory_space<vmem>>) attributes {dimension_semantics = [#tpu.dimension_semantics<parallel>], iteration_bounds = array<i64: 1>, scalar_prefetch = 0 : i64, scratch_operands = 0 : i64, tpu.core_type = #tpu.core_type<tc>, window_params = [{transform_indices = @transform_0, window_bounds = array<i64: 8, 128>}, {pipeline_mode = #tpu.pipeline_mode<synchronous>, transform_indices = @transform_1, window_bounds = array<i64: 6, 128, 128>}, {pipeline_mode = #tpu.pipeline_mode<synchronous>, transform_indices = @transform_2, window_bounds = array<i64: 6, 128, 128>}, {pipeline_mode = #tpu.pipeline_mode<synchronous>, transform_indices = @transform_3, window_bounds = array<i64: 6, 128, 128>}, {transform_indices = @transform_4, window_bounds = array<i64: 8, 128>}]} {
    %c0 = arith.constant 0 : index
    %c0_0 = arith.constant 0 : index
    %0 = vector.load %arg1[%c0, %c0_0] : memref<8x128xf32, #tpu.memory_space<vmem>>, vector<8x128xf32>
    %c0_1 = arith.constant 0 : index
    %c0_2 = arith.constant 0 : index
    %c0_3 = arith.constant 0 : index
    %1 = vector.load %arg2[%c0_1, %c0_2, %c0_3] : memref<6x128x128xf32, #tpu.memory_space<vmem>>, vector<1x128x128xf32>
    %2 = vector.shape_cast %1 : vector<1x128x128xf32> to vector<128x128xf32>
    %c0_4 = arith.constant 0 : index
    %c0_5 = arith.constant 0 : index
    %c0_6 = arith.constant 0 : index
    %3 = vector.load %arg3[%c0_4, %c0_5, %c0_6] : memref<6x128x128xf32, #tpu.memory_space<vmem>>, vector<1x128x128xf32>
    %4 = vector.shape_cast %3 : vector<1x128x128xf32> to vector<128x128xf32>
    %c0_7 = arith.constant 0 : index
    %c0_8 = arith.constant 0 : index
    %c0_9 = arith.constant 0 : index
    %5 = vector.load %arg4[%c0_7, %c0_8, %c0_9] : memref<6x128x128xf32, #tpu.memory_space<vmem>>, vector<1x128x128xf32>
    %6 = vector.shape_cast %5 : vector<1x128x128xf32> to vector<128x128xf32>
    %7 = arith.mulf %4, %6 : vector<128x128xf32>
    %8 = arith.addf %2, %7 : vector<128x128xf32>
    %9 = arith.truncf %8 : vector<128x128xf32> to vector<128x128xbf16>
    %10 = arith.truncf %0 : vector<8x128xf32> to vector<8x128xbf16>
    %cst = arith.constant dense<0.000000e+00> : vector<8x128xf32>
    %11 = tpu.matmul %10, %9, %cst {dimension_numbers = #tpu.dot_dimension_numbers<[1], [0], [0], [1], [0, 0, 1, 1], [], []>} : vector<8x128xbf16>, vector<128x128xbf16>, vector<8x128xf32> -> vector<8x128xf32>
    %cst_10 = arith.constant 0.000000e+00 : f32
    %12 = vector.broadcast %cst_10 : f32 to vector<8x128xf32>
    %13 = arith.maximumf %11, %12 : vector<8x128xf32>
    %c1 = arith.constant 1 : index
    %c0_11 = arith.constant 0 : index
    %c0_12 = arith.constant 0 : index
    %14 = vector.load %arg2[%c1, %c0_11, %c0_12] : memref<6x128x128xf32, #tpu.memory_space<vmem>>, vector<1x128x128xf32>
    %15 = vector.shape_cast %14 : vector<1x128x128xf32> to vector<128x128xf32>
    %c1_13 = arith.constant 1 : index
    %c0_14 = arith.constant 0 : index
    %c0_15 = arith.constant 0 : index
    %16 = vector.load %arg3[%c1_13, %c0_14, %c0_15] : memref<6x128x128xf32, #tpu.memory_space<vmem>>, vector<1x128x128xf32>
    %17 = vector.shape_cast %16 : vector<1x128x128xf32> to vector<128x128xf32>
    %c1_16 = arith.constant 1 : index
    %c0_17 = arith.constant 0 : index
    %c0_18 = arith.constant 0 : index
    %18 = vector.load %arg4[%c1_16, %c0_17, %c0_18] : memref<6x128x128xf32, #tpu.memory_space<vmem>>, vector<1x128x128xf32>
    %19 = vector.shape_cast %18 : vector<1x128x128xf32> to vector<128x128xf32>
    %20 = arith.mulf %17, %19 : vector<128x128xf32>
    %21 = arith.addf %15, %20 : vector<128x128xf32>
    %22 = arith.truncf %21 : vector<128x128xf32> to vector<128x128xbf16>
    %23 = arith.truncf %13 : vector<8x128xf32> to vector<8x128xbf16>
    %cst_19 = arith.constant dense<0.000000e+00> : vector<8x128xf32>
    %24 = tpu.matmul %23, %22, %cst_19 {dimension_numbers = #tpu.dot_dimension_numbers<[1], [0], [0], [1], [0, 0, 1, 1], [], []>} : vector<8x128xbf16>, vector<128x128xbf16>, vector<8x128xf32> -> vector<8x128xf32>
    %cst_20 = arith.constant 0.000000e+00 : f32
    %25 = vector.broadcast %cst_20 : f32 to vector<8x128xf32>
    %26 = arith.maximumf %24, %25 : vector<8x128xf32>
    %c2 = arith.constant 2 : index
    %c0_21 = arith.constant 0 : index
    %c0_22 = arith.constant 0 : index
    %27 = vector.load %arg2[%c2, %c0_21, %c0_22] : memref<6x128x128xf32, #tpu.memory_space<vmem>>, vector<1x128x128xf32>
    %28 = vector.shape_cast %27 : vector<1x128x128xf32> to vector<128x128xf32>
    %c2_23 = arith.constant 2 : index
    %c0_24 = arith.constant 0 : index
    %c0_25 = arith.constant 0 : index
    %29 = vector.load %arg3[%c2_23, %c0_24, %c0_25] : memref<6x128x128xf32, #tpu.memory_space<vmem>>, vector<1x128x128xf32>
    %30 = vector.shape_cast %29 : vector<1x128x128xf32> to vector<128x128xf32>
    %c2_26 = arith.constant 2 : index
    %c0_27 = arith.constant 0 : index
    %c0_28 = arith.constant 0 : index
    %31 = vector.load %arg4[%c2_26, %c0_27, %c0_28] : memref<6x128x128xf32, #tpu.memory_space<vmem>>, vector<1x128x128xf32>
    %32 = vector.shape_cast %31 : vector<1x128x128xf32> to vector<128x128xf32>
    %33 = arith.mulf %30, %32 : vector<128x128xf32>
    %34 = arith.addf %28, %33 : vector<128x128xf32>
    %35 = arith.truncf %34 : vector<128x128xf32> to vector<128x128xbf16>
    %36 = arith.truncf %26 : vector<8x128xf32> to vector<8x128xbf16>
    %cst_29 = arith.constant dense<0.000000e+00> : vector<8x128xf32>
    %37 = tpu.matmul %36, %35, %cst_29 {dimension_numbers = #tpu.dot_dimension_numbers<[1], [0], [0], [1], [0, 0, 1, 1], [], []>} : vector<8x128xbf16>, vector<128x128xbf16>, vector<8x128xf32> -> vector<8x128xf32>
    %cst_30 = arith.constant 0.000000e+00 : f32
    %38 = vector.broadcast %cst_30 : f32 to vector<8x128xf32>
    %39 = arith.maximumf %37, %38 : vector<8x128xf32>
    %c3 = arith.constant 3 : index
    %c0_31 = arith.constant 0 : index
    %c0_32 = arith.constant 0 : index
    %40 = vector.load %arg2[%c3, %c0_31, %c0_32] : memref<6x128x128xf32, #tpu.memory_space<vmem>>, vector<1x128x128xf32>
    %41 = vector.shape_cast %40 : vector<1x128x128xf32> to vector<128x128xf32>
    %c3_33 = arith.constant 3 : index
    %c0_34 = arith.constant 0 : index
    %c0_35 = arith.constant 0 : index
    %42 = vector.load %arg3[%c3_33, %c0_34, %c0_35] : memref<6x128x128xf32, #tpu.memory_space<vmem>>, vector<1x128x128xf32>
    %43 = vector.shape_cast %42 : vector<1x128x128xf32> to vector<128x128xf32>
    %c3_36 = arith.constant 3 : index
    %c0_37 = arith.constant 0 : index
    %c0_38 = arith.constant 0 : index
    %44 = vector.load %arg4[%c3_36, %c0_37, %c0_38] : memref<6x128x128xf32, #tpu.memory_space<vmem>>, vector<1x128x128xf32>
    %45 = vector.shape_cast %44 : vector<1x128x128xf32> to vector<128x128xf32>
    %46 = arith.mulf %43, %45 : vector<128x128xf32>
    %47 = arith.addf %41, %46 : vector<128x128xf32>
    %48 = arith.truncf %47 : vector<128x128xf32> to vector<128x128xbf16>
    %49 = arith.truncf %39 : vector<8x128xf32> to vector<8x128xbf16>
    %cst_39 = arith.constant dense<0.000000e+00> : vector<8x128xf32>
    %50 = tpu.matmul %49, %48, %cst_39 {dimension_numbers = #tpu.dot_dimension_numbers<[1], [0], [0], [1], [0, 0, 1, 1], [], []>} : vector<8x128xbf16>, vector<128x128xbf16>, vector<8x128xf32> -> vector<8x128xf32>
    %cst_40 = arith.constant 0.000000e+00 : f32
    %51 = vector.broadcast %cst_40 : f32 to vector<8x128xf32>
    %52 = arith.maximumf %50, %51 : vector<8x128xf32>
    %c4 = arith.constant 4 : index
    %c0_41 = arith.constant 0 : index
    %c0_42 = arith.constant 0 : index
    %53 = vector.load %arg2[%c4, %c0_41, %c0_42] : memref<6x128x128xf32, #tpu.memory_space<vmem>>, vector<1x128x128xf32>
    %54 = vector.shape_cast %53 : vector<1x128x128xf32> to vector<128x128xf32>
    %c4_43 = arith.constant 4 : index
    %c0_44 = arith.constant 0 : index
    %c0_45 = arith.constant 0 : index
    %55 = vector.load %arg3[%c4_43, %c0_44, %c0_45] : memref<6x128x128xf32, #tpu.memory_space<vmem>>, vector<1x128x128xf32>
    %56 = vector.shape_cast %55 : vector<1x128x128xf32> to vector<128x128xf32>
    %c4_46 = arith.constant 4 : index
    %c0_47 = arith.constant 0 : index
    %c0_48 = arith.constant 0 : index
    %57 = vector.load %arg4[%c4_46, %c0_47, %c0_48] : memref<6x128x128xf32, #tpu.memory_space<vmem>>, vector<1x128x128xf32>
    %58 = vector.shape_cast %57 : vector<1x128x128xf32> to vector<128x128xf32>
    %59 = arith.mulf %56, %58 : vector<128x128xf32>
    %60 = arith.addf %54, %59 : vector<128x128xf32>
    %61 = arith.truncf %60 : vector<128x128xf32> to vector<128x128xbf16>
    %62 = arith.truncf %52 : vector<8x128xf32> to vector<8x128xbf16>
    %cst_49 = arith.constant dense<0.000000e+00> : vector<8x128xf32>
    %63 = tpu.matmul %62, %61, %cst_49 {dimension_numbers = #tpu.dot_dimension_numbers<[1], [0], [0], [1], [0, 0, 1, 1], [], []>} : vector<8x128xbf16>, vector<128x128xbf16>, vector<8x128xf32> -> vector<8x128xf32>
    %cst_50 = arith.constant 0.000000e+00 : f32
    %64 = vector.broadcast %cst_50 : f32 to vector<8x128xf32>
    %65 = arith.maximumf %63, %64 : vector<8x128xf32>
    %c5 = arith.constant 5 : index
    %c0_51 = arith.constant 0 : index
    %c0_52 = arith.constant 0 : index
    %66 = vector.load %arg2[%c5, %c0_51, %c0_52] : memref<6x128x128xf32, #tpu.memory_space<vmem>>, vector<1x128x128xf32>
    %67 = vector.shape_cast %66 : vector<1x128x128xf32> to vector<128x128xf32>
    %c5_53 = arith.constant 5 : index
    %c0_54 = arith.constant 0 : index
    %c0_55 = arith.constant 0 : index
    %68 = vector.load %arg3[%c5_53, %c0_54, %c0_55] : memref<6x128x128xf32, #tpu.memory_space<vmem>>, vector<1x128x128xf32>
    %69 = vector.shape_cast %68 : vector<1x128x128xf32> to vector<128x128xf32>
    %c5_56 = arith.constant 5 : index
    %c0_57 = arith.constant 0 : index
    %c0_58 = arith.constant 0 : index
    %70 = vector.load %arg4[%c5_56, %c0_57, %c0_58] : memref<6x128x128xf32, #tpu.memory_space<vmem>>, vector<1x128x128xf32>
    %71 = vector.shape_cast %70 : vector<1x128x128xf32> to vector<128x128xf32>
    %72 = arith.mulf %69, %71 : vector<128x128xf32>
    %73 = arith.addf %67, %72 : vector<128x128xf32>
    %74 = arith.truncf %73 : vector<128x128xf32> to vector<128x128xbf16>
    %75 = arith.truncf %65 : vector<8x128xf32> to vector<8x128xbf16>
    %cst_59 = arith.constant dense<0.000000e+00> : vector<8x128xf32>
    %76 = tpu.matmul %75, %74, %cst_59 {dimension_numbers = #tpu.dot_dimension_numbers<[1], [0], [0], [1], [0, 0, 1, 1], [], []>} : vector<8x128xbf16>, vector<128x128xbf16>, vector<8x128xf32> -> vector<8x128xf32>
    %77 = tpu.iota {dimensions = array<i32: 1>} : vector<8x128xi32>
    %c3_i32 = arith.constant 3 : i32
    %78 = vector.broadcast %c3_i32 : i32 to vector<8x128xi32>
    %79 = arith.cmpi slt, %77, %78 : vector<8x128xi32>
    %cst_60 = arith.constant -1.000000e+30 : f32
    %80 = vector.broadcast %cst_60 : f32 to vector<8x128xf32>
    %81 = arith.select %79, %76, %80 : vector<8x128xi1>, vector<8x128xf32>
    %cst_61 = arith.constant dense<0xFF800000> : vector<8xf32>
    %82 = vector.multi_reduction <maximumf>, %81, %cst_61 [1] : vector<8x128xf32> to vector<8xf32>
    %83 = vector.shape_cast %82 : vector<8xf32> to vector<8x1xf32>
    %84 = vector.broadcast %83 : vector<8x1xf32> to vector<8x128xf32>
    %85 = arith.subf %81, %84 : vector<8x128xf32>
    %86 = math.exp %85 : vector<8x128xf32>
    %cst_62 = arith.constant dense<0.000000e+00> : vector<8xf32>
    %87 = vector.multi_reduction <add>, %86, %cst_62 [1] : vector<8x128xf32> to vector<8xf32>
    %88 = vector.shape_cast %87 : vector<8xf32> to vector<8x1xf32>
    %89 = math.log %88 : vector<8x1xf32>
    %90 = vector.broadcast %89 : vector<8x1xf32> to vector<8x128xf32>
    %91 = arith.subf %85, %90 : vector<8x128xf32>
    %c0_63 = arith.constant 0 : index
    %c0_64 = arith.constant 0 : index
    %92 = vector.load %arg5[%c0_63, %c0_64] : memref<8x128xf32, #tpu.memory_space<vmem>>, vector<8x128xf32>
    tpu.vector_store %arg5[%c0_63, %c0_64], %91 {strides = array<i32>} : memref<8x128xf32, #tpu.memory_space<vmem>>, vector<8x128xf32>,
    return
  }
  func.func @transform_0(%arg0: i32) -> (i32, i32) {
    %c0_i32 = arith.constant 0 : i32
    %c0_i32_0 = arith.constant 0 : i32
    return %arg0, %c0_i32 : i32, i32
  }
  func.func @transform_1(%arg0: i32) -> (i32, i32, i32) {
    %c0_i32 = arith.constant 0 : i32
    %c0_i32_0 = arith.constant 0 : i32
    %c0_i32_1 = arith.constant 0 : i32
    %c0_i32_2 = arith.constant 0 : i32
    return %c0_i32, %c0_i32_0, %c0_i32_1 : i32, i32, i32
  }
  func.func @transform_2(%arg0: i32) -> (i32, i32, i32) {
    %c0_i32 = arith.constant 0 : i32
    %c0_i32_0 = arith.constant 0 : i32
    %c0_i32_1 = arith.constant 0 : i32
    %c0_i32_2 = arith.constant 0 : i32
    return %c0_i32, %c0_i32_0, %c0_i32_1 : i32, i32, i32
  }
  func.func @transform_3(%arg0: i32) -> (i32, i32, i32) {
    %c0_i32 = arith.constant 0 : i32
    %c0_i32_0 = arith.constant 0 : i32
    %c0_i32_1 = arith.constant 0 : i32
    %c0_i32_2 = arith.constant 0 : i32
    return %c0_i32, %c0_i32_0, %c0_i32_1 : i32, i32, i32
  }
  func.func @transform_4(%arg0: i32) -> (i32, i32) {
    %c0_i32 = arith.constant 0 : i32
    %c0_i32_0 = arith.constant 0 : i32
    return %arg0, %c0_i32 : i32, i32
  }
}

</mosaic_0001>

<llo_original>
// kernel: tpu_custom_call.1
$region0: #{tpu_custom_call.1}
  #allocation0 [shape = 'u32[]', space=smem, size = 0x4, offset = 0x4, fixed_abs, tag = 'smem constant byte address 0x4 - core index']
  #allocation1 [shape = 'u32[144,128]{1,0:T(1,128)}', space=vmem, size = 0x12000, scoped, tag = 'internal scratch']
  %s0 = inlined_call_operand.hbm [shape: f32[8,128], index: 0, kind: input, shape index: {}]
  %s1 = inlined_call_operand.hbm [shape: f32[6,128,128], index: 1, kind: input, shape index: {}]
  %s2 = inlined_call_operand.hbm [shape: f32[6,128,128], index: 2, kind: input, shape index: {}]
  %s3 = inlined_call_operand.hbm [shape: f32[6,128,128], index: 3, kind: input, shape index: {}]
  %s4 = inlined_call_operand.hbm [shape: f32[8,128], index: 4, kind: output, shape index: {}]
  %s5 = sld [smem:[#allocation0]]
  $region42: #{tpu_custom_call.1} parent=0
    _
  %s7 = ssub.s32 1, %s5
  %s8 = scalar_select 0, %s7, %s5
  $region1: #{tpu_custom_call.1} parent=0
    #allocation2 [shape = 'u8[4096]{0}', space=vmem, size = 0x1000, scoped, tag = 'input window, operand 0, single buffered']
    #allocation3 [shape = 's32[1]{0}', space=sflag, size = 0x4, scoped, tag = 'scoped memory for tpu_custom_call.1']
    #allocation4 [shape = 's32[1]{0}', space=sflag, size = 0x4, scoped, tag = 'scoped memory for tpu_custom_call.1']
    #allocation5 [shape = 'u8[393216]{0}', space=vmem, size = 0x60000, scoped, tag = 'input window, operand 1, single buffered']
    #allocation6 [shape = 's32[1]{0}', space=sflag, size = 0x4, scoped, tag = 'scoped memory for tpu_custom_call.1']
    #allocation7 [shape = 'u8[393216]{0}', space=vmem, size = 0x60000, scoped, tag = 'input window, operand 2, single buffered']
    #allocation8 [shape = 'u8[393216]{0}', space=vmem, size = 0x60000, scoped, tag = 'input window, operand 3, single buffered']
    #allocation9 [shape = 's32[1]{0}', space=sflag, size = 0x4, scoped, tag = 'scoped memory for tpu_custom_call.1']
    #allocation10 [shape = 'u8[4096]{0}', space=vmem, size = 0x1000, scoped, tag = 'output window, operand 0, single buffered']
    %9 = vsyncpa [#allocation3], 0
    %10 = vsyncpa [#allocation6], 0
    %11 = vsyncpa [#allocation9], 0
    %12 = vsyncpa [#allocation4], 0
    // Predicated region
    $region2: #{tpu_custom_call.1} parent=1 // pred_check
      _
    $region3: #{tpu_custom_call.1} parent=1 // pred_check_branch
      %14 = sbr.rel (0) target = $region5
    $region4: #{tpu_custom_call.1} parent=1 // pred_region
      %s16 = ssub.s32 128, 128
      %17 = vsyncadd [#allocation3], %s16
      %s19 = sshll.u32 [#allocation2], 4
      %s20 = int_to_ptr.vmem [resolvable:$true] %s19
      %22 = dma.hbm_to_vmem [thread:$0]  %s0, 128, %s20, [#allocation3]
    $region5: #{tpu_custom_call.1} parent=1 // pred_fallthru
      _
    // Predicated region
    $region6: #{tpu_custom_call.1} parent=1 // pred_check
      _
    $region7: #{tpu_custom_call.1} parent=1 // pred_check_branch
      %24 = sbr.rel (0) target = $region9
    $region8: #{tpu_custom_call.1} parent=1 // pred_region
      %s26 = ssub.s32 12288, 12288
      %27 = vsyncadd [#allocation6], %s26
      %s28 = sshll.u32 [#allocation5], 4
      %s29 = int_to_ptr.vmem [resolvable:$true] %s28
      %34 = dma.hbm_to_vmem [thread:$0]  %s1, 12288, %s29, [#allocation6], 128, 128, 8
    $region9: #{tpu_custom_call.1} parent=1 // pred_fallthru
      _
    // Predicated region
    $region10: #{tpu_custom_call.1} parent=1 // pred_check
      _
    $region11: #{tpu_custom_call.1} parent=1 // pred_check_branch
      %36 = sbr.rel (0) target = $region13
    $region12: #{tpu_custom_call.1} parent=1 // pred_region
      %s38 = ssub.s32 12288, 12288
      %39 = vsyncadd [#allocation6], %s38
      %s40 = sshll.u32 [#allocation7], 4
      %s41 = int_to_ptr.vmem [resolvable:$true] %s40
      %46 = dma.hbm_to_vmem [thread:$0]  %s2, 12288, %s41, [#allocation6], 128, 128, 8
    $region13: #{tpu_custom_call.1} parent=1 // pred_fallthru
      _
    // Predicated region
    $region14: #{tpu_custom_call.1} parent=1 // pred_check
      _
    $region15: #{tpu_custom_call.1} parent=1 // pred_check_branch
      %48 = sbr.rel (0) target = $region17
    $region16: #{tpu_custom_call.1} parent=1 // pred_region
      %s50 = ssub.s32 12288, 12288
      %51 = vsyncadd [#allocation9], %s50
      %s52 = sshll.u32 [#allocation8], 4
      %s53 = int_to_ptr.vmem [resolvable:$true] %s52
      %58 = dma.hbm_to_vmem [thread:$0]  %s3, 12288, %s53, [#allocation9], 128, 128, 8
    $region17: #{tpu_custom_call.1} parent=1 // pred_fallthru
      _
    // Predicated region
    $region18: #{tpu_custom_call.1} parent=1 // pred_check
      _
    $region19: #{tpu_custom_call.1} parent=1 // pred_check_branch
      %60 = sbr.rel (0) target = $region21
    $region20: #{tpu_custom_call.1} parent=1 // pred_region
      %61 = dma.done [#allocation3], 128
    $region21: #{tpu_custom_call.1} parent=1 // pred_fallthru
      _
    // Predicated region
    $region22: #{tpu_custom_call.1} parent=1 // pred_check
      _
    $region23: #{tpu_custom_call.1} parent=1 // pred_check_branch
      %63 = sbr.rel (0) target = $region25
    $region24: #{tpu_custom_call.1} parent=1 // pred_region
      %64 = dma.done [#allocation6], 12288
    $region25: #{tpu_custom_call.1} parent=1 // pred_fallthru
      _
    // Predicated region
    $region26: #{tpu_custom_call.1} parent=1 // pred_check
      _
    $region27: #{tpu_custom_call.1} parent=1 // pred_check_branch
      %66 = sbr.rel (0) target = $region29
    $region28: #{tpu_custom_call.1} parent=1 // pred_region
      %67 = dma.done [#allocation6], 12288
    $region29: #{tpu_custom_call.1} parent=1 // pred_fallthru
      _
    // Predicated region
    $region30: #{tpu_custom_call.1} parent=1 // pred_check
      _
    $region31: #{tpu_custom_call.1} parent=1 // pred_check_branch
      %69 = sbr.rel (0) target = $region33
    $region32: #{tpu_custom_call.1} parent=1 // pred_region
      %70 = dma.done [#allocation9], 12288
    $region33: #{tpu_custom_call.1} parent=1 // pred_fallthru
      _
    %v72 = vld [vmem:[#allocation2] sm:$0xff]
    %v73 = vld [vmem:[#allocation5] sm:$0xff]
    %v74 = vld [vmem:[#allocation5 + $0x8] sm:$0xff]
    %v75 = vld [vmem:[#allocation5 + $0x10] sm:$0xff]
    %v76 = vld [vmem:[#allocation5 + $0x18] sm:$0xff]
    %v77 = vld [vmem:[#allocation5 + $0x20] sm:$0xff]
    %v78 = vld [vmem:[#allocation5 + $0x28] sm:$0xff]
    %v79 = vld [vmem:[#allocation5 + $0x30] sm:$0xff]
    %v80 = vld [vmem:[#allocation5 + $0x38] sm:$0xff]
    %v81 = vld [vmem:[#allocation5 + $0x40] sm:$0xff]
    %v82 = vld [vmem:[#allocation5 + $0x48] sm:$0xff]
    %v83 = vld [vmem:[#allocation5 + $0x50] sm:$0xff]
    %v84 = vld [vmem:[#allocation5 + $0x58] sm:$0xff]
    %v85 = vld [vmem:[#allocation5 + $0x60] sm:$0xff]
    %v86 = vld [vmem:[#allocation5 + $0x68] sm:$0xff]
    %v87 = vld [vmem:[#allocation5 + $0x70] sm:$0xff]
    %v88 = vld [vmem:[#allocation5 + $0x78] sm:$0xff]
    %v89 = vld [vmem:[#allocation7] sm:$0xff]
    %v90 = vld [vmem:[#allocation7 + $0x8] sm:$0xff]
    %v91 = vld [vmem:[#allocation7 + $0x10] sm:$0xff]
    %v92 = vld [vmem:[#allocation7 + $0x18] sm:$0xff]
    %v93 = vld [vmem:[#allocation7 + $0x20] sm:$0xff]
    %v94 = vld [vmem:[#allocation7 + $0x28] sm:$0xff]
    %v95 = vld [vmem:[#allocation7 + $0x30] sm:$0xff]
    %v96 = vld [vmem:[#allocation7 + $0x38] sm:$0xff]
    %v97 = vld [vmem:[#allocation7 + $0x40] sm:$0xff]
    %v98 = vld [vmem:[#allocation7 + $0x48] sm:$0xff]
    %v99 = vld [vmem:[#allocation7 + $0x50] sm:$0xff]
    %v100 = vld [vmem:[#allocation7 + $0x58] sm:$0xff]
    %v101 = vld [vmem:[#allocation7 + $0x60] sm:$0xff]
    %v102 = vld [vmem:[#allocation7 + $0x68] sm:$0xff]
    %v103 = vld [vmem:[#allocation7 + $0x70] sm:$0xff]
    %v104 = vld [vmem:[#allocation7 + $0x78] sm:$0xff]
    %v105 = vld [vmem:[#allocation8] sm:$0xff]
    %v106 = vld [vmem:[#allocation8 + $0x8] sm:$0xff]
    %v107 = vld [vmem:[#allocation8 + $0x10] sm:$0xff]
    %v108 = vld [vmem:[#allocation8 + $0x18] sm:$0xff]
    %v109 = vld [vmem:[#allocation8 + $0x20] sm:$0xff]
    %v110 = vld [vmem:[#allocation8 + $0x28] sm:$0xff]
    %v111 = vld [vmem:[#allocation8 + $0x30] sm:$0xff]
    %v112 = vld [vmem:[#allocation8 + $0x38] sm:$0xff]
    %v113 = vld [vmem:[#allocation8 + $0x40] sm:$0xff]
    %v114 = vld [vmem:[#allocation8 + $0x48] sm:$0xff]
    %v115 = vld [vmem:[#allocation8 + $0x50] sm:$0xff]
    %v116 = vld [vmem:[#allocation8 + $0x58] sm:$0xff]
    %v117 = vld [vmem:[#allocation8 + $0x60] sm:$0xff]
    %v118 = vld [vmem:[#allocation8 + $0x68] sm:$0xff]
    %v119 = vld [vmem:[#allocation8 + $0x70] sm:$0xff]
    %v120 = vld [vmem:[#allocation8 + $0x78] sm:$0xff]
    %v121 = vmul.f32 %v89, %v105
    %v122 = vmul.f32 %v90, %v106
    %v123 = vmul.f32 %v91, %v107
    %v124 = vmul.f32 %v92, %v108
    %v125 = vmul.f32 %v93, %v109
    %v126 = vmul.f32 %v94, %v110
    %v127 = vmul.f32 %v95, %v111
    %v128 = vmul.f32 %v96, %v112
    %v129 = vmul.f32 %v97, %v113
    %v130 = vmul.f32 %v98, %v114
    %v131 = vmul.f32 %v99, %v115
    %v132 = vmul.f32 %v100, %v116
    %v133 = vmul.f32 %v101, %v117
    %v134 = vmul.f32 %v102, %v118
    %v135 = vmul.f32 %v103, %v119
    %v136 = vmul.f32 %v104, %v120
    %v137 = vadd.f32 %v73, %v121
    %v138 = vadd.f32 %v74, %v122
    %v139 = vadd.f32 %v75, %v123
    %v140 = vadd.f32 %v76, %v124
    %v141 = vadd.f32 %v77, %v125
    %v142 = vadd.f32 %v78, %v126
    %v143 = vadd.f32 %v79, %v127
    %v144 = vadd.f32 %v80, %v128
    %v145 = vadd.f32 %v81, %v129
    %v146 = vadd.f32 %v82, %v130
    %v147 = vadd.f32 %v83, %v131
    %v148 = vadd.f32 %v84, %v132
    %v149 = vadd.f32 %v85, %v133
    %v150 = vadd.f32 %v86, %v134
    %v151 = vadd.f32 %v87, %v135
    %v152 = vadd.f32 %v88, %v136
    %v153 = vpack.c.bf16 %v138, %v137
    %v154 = vpack.c.bf16 %v140, %v139
    %v155 = vpack.c.bf16 %v142, %v141
    %v156 = vpack.c.bf16 %v144, %v143
    %v157 = vpack.c.bf16 %v146, %v145
    %v158 = vpack.c.bf16 %v148, %v147
    %v159 = vpack.c.bf16 %v150, %v149
    %v160 = vpack.c.bf16 %v152, %v151
    %v161 = vpack.c.bf16 %v72, %v72
    %162 = vmatprep.subr.bf16.mxu0 0
    %163 = vmatpush1.bf16.msra.mxu0 %v153
    %164 = vmatprep.subr.bf16.mxu0 0
    %165 = vmatpush1.bf16.msra.mxu0 %v154
    %166 = vmatprep.subr.bf16.mxu0 0
    %167 = vmatpush1.bf16.msra.mxu0 %v155
    %168 = vmatprep.subr.bf16.mxu0 0
    %169 = vmatpush1.bf16.msra.mxu0 %v156
    %170 = vmatprep.subr.bf16.mxu0 0
    %171 = vmatpush1.bf16.msra.mxu0 %v157
    %172 = vmatprep.subr.bf16.mxu0 0
    %173 = vmatpush1.bf16.msra.mxu0 %v158
    %174 = vmatprep.subr.bf16.mxu0 0
    %175 = vmatpush1.bf16.msra.mxu0 %v159
    %176 = vmatprep.subr.bf16.mxu0 0
    %177 = vmatpush1.bf16.msra.mxu0 %v160
    %178 = vmatprep.subr.bf16.mxu0 0
    %179 = vmatpush1.bf16.msra.mxu0 0
    %180 = vmatprep.subr.bf16.mxu0 0
    %181 = vmatpush1.bf16.msra.mxu0 0
    %182 = vmatprep.subr.bf16.mxu0 0
    %183 = vmatpush1.bf16.msra.mxu0 0
    %184 = vmatprep.subr.bf16.mxu0 0
    %185 = vmatpush1.bf16.msra.mxu0 0
    %186 = vmatprep.subr.bf16.mxu0 0
    %187 = vmatpush1.bf16.msra.mxu0 0
    %188 = vmatprep.subr.bf16.mxu0 0
    %189 = vmatpush1.bf16.msra.mxu0 0
    %190 = vmatprep.subr.bf16.mxu0 0
    %191 = vmatpush1.bf16.msra.mxu0 0
    %192 = vmatprep.subr.bf16.mxu0 0
    %193 = vmatpush1.bf16.msra.mxu0 0
    %194 = vmatprep.mubr.bf16.mxu0 0
    %195 = vmatmul.mubr.bf16.gmra.mrb[0].mxu0 %v161
    %v196 = vpop.f32.mrb[0].mxu0
    %v197 = vadd.f32 0.0, %v196
    %v198 = vpop.f32.mrb[0].mxu0
    %v199 = vpop.f32.mrb[0].mxu0
    %v200 = vpop.f32.mrb[0].mxu0
    %201 = vdwg.mxu0
    %v202 = vmax.f32 %v197, 0.0
    %s203 = scalar_lea.vmem [#allocation5], 128
    %v204 = vld [vmem:[%s203] sm:$0xff]
    %v205 = vld [vmem:[%s203 + $0x8] sm:$0xff]
    %v206 = vld [vmem:[%s203 + $0x10] sm:$0xff]
    %v207 = vld [vmem:[%s203 + $0x18] sm:$0xff]
    %v208 = vld [vmem:[%s203 + $0x20] sm:$0xff]
    %v209 = vld [vmem:[%s203 + $0x28] sm:$0xff]
    %v210 = vld [vmem:[%s203 + $0x30] sm:$0xff]
    %v211 = vld [vmem:[%s203 + $0x38] sm:$0xff]
    %v212 = vld [vmem:[%s203 + $0x40] sm:$0xff]
    %v213 = vld [vmem:[%s203 + $0x48] sm:$0xff]
    %v214 = vld [vmem:[%s203 + $0x50] sm:$0xff]
    %v215 = vld [vmem:[%s203 + $0x58] sm:$0xff]
    %v216 = vld [vmem:[%s203 + $0x60] sm:$0xff]
    %v217 = vld [vmem:[%s203 + $0x68] sm:$0xff]
    %v218 = vld [vmem:[%s203 + $0x70] sm:$0xff]
    %v219 = vld [vmem:[%s203 + $0x78] sm:$0xff]
    %s220 = scalar_lea.vmem [#allocation7], 128
    %v221 = vld [vmem:[%s220] sm:$0xff]
    %v222 = vld [vmem:[%s220 + $0x8] sm:$0xff]
    %v223 = vld [vmem:[%s220 + $0x10] sm:$0xff]
    %v224 = vld [vmem:[%s220 + $0x18] sm:$0xff]
    %v225 = vld [vmem:[%s220 + $0x20] sm:$0xff]
    %v226 = vld [vmem:[%s220 + $0x28] sm:$0xff]
    %v227 = vld [vmem:[%s220 + $0x30] sm:$0xff]
    %v228 = vld [vmem:[%s220 + $0x38] sm:$0xff]
    %v229 = vld [vmem:[%s220 + $0x40] sm:$0xff]
    %v230 = vld [vmem:[%s220 + $0x48] sm:$0xff]
    %v231 = vld [vmem:[%s220 + $0x50] sm:$0xff]
    %v232 = vld [vmem:[%s220 + $0x58] sm:$0xff]
    %v233 = vld [vmem:[%s220 + $0x60] sm:$0xff]
    %v234 = vld [vmem:[%s220 + $0x68] sm:$0xff]
    %v235 = vld [vmem:[%s220 + $0x70] sm:$0xff]
    %v236 = vld [vmem:[%s220 + $0x78] sm:$0xff]
    %s237 = scalar_lea.vmem [#allocation8], 128
    %v238 = vld [vmem:[%s237] sm:$0xff]
    %v239 = vld [vmem:[%s237 + $0x8] sm:$0xff]
    %v240 = vld [vmem:[%s237 + $0x10] sm:$0xff]
    %v241 = vld [vmem:[%s237 + $0x18] sm:$0xff]
    %v242 = vld [vmem:[%s237 + $0x20] sm:$0xff]
    %v243 = vld [vmem:[%s237 + $0x28] sm:$0xff]
    %v244 = vld [vmem:[%s237 + $0x30] sm:$0xff]
    %v245 = vld [vmem:[%s237 + $0x38] sm:$0xff]
    %v246 = vld [vmem:[%s237 + $0x40] sm:$0xff]
    %v247 = vld [vmem:[%s237 + $0x48] sm:$0xff]
    %v248 = vld [vmem:[%s237 + $0x50] sm:$0xff]
    %v249 = vld [vmem:[%s237 + $0x58] sm:$0xff]
    %v250 = vld [vmem:[%s237 + $0x60] sm:$0xff]
    %v251 = vld [vmem:[%s237 + $0x68] sm:$0xff]
    %v252 = vld [vmem:[%s237 + $0x70] sm:$0xff]
    %v253 = vld [vmem:[%s237 + $0x78] sm:$0xff]
    %v254 = vmul.f32 %v221, %v238
    %v255 = vmul.f32 %v222, %v239
    %v256 = vmul.f32 %v223, %v240
    %v257 = vmul.f32 %v224, %v241
    %v258 = vmul.f32 %v225, %v242
    %v259 = vmul.f32 %v226, %v243
    %v260 = vmul.f32 %v227, %v244
    %v261 = vmul.f32 %v228, %v245
    %v262 = vmul.f32 %v229, %v246
    %v263 = vmul.f32 %v230, %v247
    %v264 = vmul.f32 %v231, %v248
    %v265 = vmul.f32 %v232, %v249
    %v266 = vmul.f32 %v233, %v250
    %v267 = vmul.f32 %v234, %v251
    %v268 = vmul.f32 %v235, %v252
    %v269 = vmul.f32 %v236, %v253
    %v270 = vadd.f32 %v204, %v254
    %v271 = vadd.f32 %v205, %v255
    %v272 = vadd.f32 %v206, %v256
    %v273 = vadd.f32 %v207, %v257
    %v274 = vadd.f32 %v208, %v258
    %v275 = vadd.f32 %v209, %v259
    %v276 = vadd.f32 %v210, %v260
    %v277 = vadd.f32 %v211, %v261
    %v278 = vadd.f32 %v212, %v262
    %v279 = vadd.f32 %v213, %v263
    %v280 = vadd.f32 %v214, %v264
    %v281 = vadd.f32 %v215, %v265
    %v282 = vadd.f32 %v216, %v266
    %v283 = vadd.f32 %v217, %v267
    %v284 = vadd.f32 %v218, %v268
    %v285 = vadd.f32 %v219, %v269
    %v286 = vpack.c.bf16 %v271, %v270
    %v287 = vpack.c.bf16 %v273, %v272
    %v288 = vpack.c.bf16 %v275, %v274
    %v289 = vpack.c.bf16 %v277, %v276
    %v290 = vpack.c.bf16 %v279, %v278
    %v291 = vpack.c.bf16 %v281, %v280
    %v292 = vpack.c.bf16 %v283, %v282
    %v293 = vpack.c.bf16 %v285, %v284
    %v294 = vpack.c.bf16 %v202, %v202
    %295 = vmatprep.subr.bf16.mxu0 0
    %296 = vmatpush1.bf16.msra.mxu0 %v286
    %297 = vmatprep.subr.bf16.mxu0 0
    %298 = vmatpush1.bf16.msra.mxu0 %v287
    %299 = vmatprep.subr.bf16.mxu0 0
    %300 = vmatpush1.bf16.msra.mxu0 %v288
    %301 = vmatprep.subr.bf16.mxu0 0
    %302 = vmatpush1.bf16.msra.mxu0 %v289
    %303 = vmatprep.subr.bf16.mxu0 0
    %304 = vmatpush1.bf16.msra.mxu0 %v290
    %305 = vmatprep.subr.bf16.mxu0 0
    %306 = vmatpush1.bf16.msra.mxu0 %v291
    %307 = vmatprep.subr.bf16.mxu0 0
    %308 = vmatpush1.bf16.msra.mxu0 %v292
    %309 = vmatprep.subr.bf16.mxu0 0
    %310 = vmatpush1.bf16.msra.mxu0 %v293
    %311 = vmatprep.subr.bf16.mxu0 0
    %312 = vmatpush1.bf16.msra.mxu0 0
    %313 = vmatprep.subr.bf16.mxu0 0
    %314 = vmatpush1.bf16.msra.mxu0 0
    %315 = vmatprep.subr.bf16.mxu0 0
    %316 = vmatpush1.bf16.msra.mxu0 0
    %317 = vmatprep.subr.bf16.mxu0 0
    %318 = vmatpush1.bf16.msra.mxu0 0
    %319 = vmatprep.subr.bf16.mxu0 0
    %320 = vmatpush1.bf16.msra.mxu0 0
    %321 = vmatprep.subr.bf16.mxu0 0
    %322 = vmatpush1.bf16.msra.mxu0 0
    %323 = vmatprep.subr.bf16.mxu0 0
    %324 = vmatpush1.bf16.msra.mxu0 0
    %325 = vmatprep.subr.bf16.mxu0 0
    %326 = vmatpush1.bf16.msra.mxu0 0
    %327 = vmatprep.mubr.bf16.mxu0 0
    %328 = vmatmul.mubr.bf16.gmra.mrb[0].mxu0 %v294
    %v329 = vpop.f32.mrb[0].mxu0
    %v330 = vadd.f32 0.0, %v329
    %v331 = vpop.f32.mrb[0].mxu0
    %v332 = vpop.f32.mrb[0].mxu0
    %v333 = vpop.f32.mrb[0].mxu0
    %334 = vdwg.mxu0
    %v335 = vmax.f32 %v330, 0.0
    %s336 = scalar_lea.vmem [#allocation5], 256
    %v337 = vld [vmem:[%s336] sm:$0xff]
    %v338 = vld [vmem:[%s336 + $0x8] sm:$0xff]
    %v339 = vld [vmem:[%s336 + $0x10] sm:$0xff]
    %v340 = vld [vmem:[%s336 + $0x18] sm:$0xff]
    %v341 = vld [vmem:[%s336 + $0x20] sm:$0xff]
    %v342 = vld [vmem:[%s336 + $0x28] sm:$0xff]
    %v343 = vld [vmem:[%s336 + $0x30] sm:$0xff]
    %v344 = vld [vmem:[%s336 + $0x38] sm:$0xff]
    %v345 = vld [vmem:[%s336 + $0x40] sm:$0xff]
    %v346 = vld [vmem:[%s336 + $0x48] sm:$0xff]
    %v347 = vld [vmem:[%s336 + $0x50] sm:$0xff]
    %v348 = vld [vmem:[%s336 + $0x58] sm:$0xff]
    %v349 = vld [vmem:[%s336 + $0x60] sm:$0xff]
    %v350 = vld [vmem:[%s336 + $0x68] sm:$0xff]
    %v351 = vld [vmem:[%s336 + $0x70] sm:$0xff]
    %v352 = vld [vmem:[%s336 + $0x78] sm:$0xff]
    %s353 = scalar_lea.vmem [#allocation7], 256
    %v354 = vld [vmem:[%s353] sm:$0xff]
    %v355 = vld [vmem:[%s353 + $0x8] sm:$0xff]
    %v356 = vld [vmem:[%s353 + $0x10] sm:$0xff]
    %v357 = vld [vmem:[%s353 + $0x18] sm:$0xff]
    %v358 = vld [vmem:[%s353 + $0x20] sm:$0xff]
    %v359 = vld [vmem:[%s353 + $0x28] sm:$0xff]
    %v360 = vld [vmem:[%s353 + $0x30] sm:$0xff]
    %v361 = vld [vmem:[%s353 + $0x38] sm:$0xff]
    %v362 = vld [vmem:[%s353 + $0x40] sm:$0xff]
    %v363 = vld [vmem:[%s353 + $0x48] sm:$0xff]
    %v364 = vld [vmem:[%s353 + $0x50] sm:$0xff]
    %v365 = vld [vmem:[%s353 + $0x58] sm:$0xff]
    %v366 = vld [vmem:[%s353 + $0x60] sm:$0xff]
    %v367 = vld [vmem:[%s353 + $0x68] sm:$0xff]
    %v368 = vld [vmem:[%s353 + $0x70] sm:$0xff]
    %v369 = vld [vmem:[%s353 + $0x78] sm:$0xff]
    %s370 = scalar_lea.vmem [#allocation8], 256
    %v371 = vld [vmem:[%s370] sm:$0xff]
    %v372 = vld [vmem:[%s370 + $0x8] sm:$0xff]
    %v373 = vld [vmem:[%s370 + $0x10] sm:$0xff]
    %v374 = vld [vmem:[%s370 + $0x18] sm:$0xff]
    %v375 = vld [vmem:[%s370 + $0x20] sm:$0xff]
    %v376 = vld [vmem:[%s370 + $0x28] sm:$0xff]
    %v377 = vld [vmem:[%s370 + $0x30] sm:$0xff]
    %v378 = vld [vmem:[%s370 + $0x38] sm:$0xff]
    %v379 = vld [vmem:[%s370 + $0x40] sm:$0xff]
    %v380 = vld [vmem:[%s370 + $0x48] sm:$0xff]
    %v381 = vld [vmem:[%s370 + $0x50] sm:$0xff]
    %v382 = vld [vmem:[%s370 + $0x58] sm:$0xff]
    %v383 = vld [vmem:[%s370 + $0x60] sm:$0xff]
    %v384 = vld [vmem:[%s370 + $0x68] sm:$0xff]
    %v385 = vld [vmem:[%s370 + $0x70] sm:$0xff]
    %v386 = vld [vmem:[%s370 + $0x78] sm:$0xff]
    %v387 = vmul.f32 %v354, %v371
    %v388 = vmul.f32 %v355, %v372
    %v389 = vmul.f32 %v356, %v373
    %v390 = vmul.f32 %v357, %v374
    %v391 = vmul.f32 %v358, %v375
    %v392 = vmul.f32 %v359, %v376
    %v393 = vmul.f32 %v360, %v377
    %v394 = vmul.f32 %v361, %v378
    %v395 = vmul.f32 %v362, %v379
    %v396 = vmul.f32 %v363, %v380
    %v397 = vmul.f32 %v364, %v381
    %v398 = vmul.f32 %v365, %v382
    %v399 = vmul.f32 %v366, %v383
    %v400 = vmul.f32 %v367, %v384
    %v401 = vmul.f32 %v368, %v385
    %v402 = vmul.f32 %v369, %v386
    %v403 = vadd.f32 %v337, %v387
    %v404 = vadd.f32 %v338, %v388
    %v405 = vadd.f32 %v339, %v389
    %v406 = vadd.f32 %v340, %v390
    %v407 = vadd.f32 %v341, %v391
    %v408 = vadd.f32 %v342, %v392
    %v409 = vadd.f32 %v343, %v393
    %v410 = vadd.f32 %v344, %v394
    %v411 = vadd.f32 %v345, %v395
    %v412 = vadd.f32 %v346, %v396
    %v413 = vadd.f32 %v347, %v397
    %v414 = vadd.f32 %v348, %v398
    %v415 = vadd.f32 %v349, %v399
    %v416 = vadd.f32 %v350, %v400
    %v417 = vadd.f32 %v351, %v401
    %v418 = vadd.f32 %v352, %v402
    %v419 = vpack.c.bf16 %v404, %v403
    %v420 = vpack.c.bf16 %v406, %v405
    %v421 = vpack.c.bf16 %v408, %v407
    %v422 = vpack.c.bf16 %v410, %v409
    %v423 = vpack.c.bf16 %v412, %v411
    %v424 = vpack.c.bf16 %v414, %v413
    %v425 = vpack.c.bf16 %v416, %v415
    %v426 = vpack.c.bf16 %v418, %v417
    %v427 = vpack.c.bf16 %v335, %v335
    %428 = vmatprep.subr.bf16.mxu0 0
    %429 = vmatpush1.bf16.msra.mxu0 %v419
    %430 = vmatprep.subr.bf16.mxu0 0
    %431 = vmatpush1.bf16.msra.mxu0 %v420
    %432 = vmatprep.subr.bf16.mxu0 0
    %433 = vmatpush1.bf16.msra.mxu0 %v421
    %434 = vmatprep.subr.bf16.mxu0 0
    %435 = vmatpush1.bf16.msra.mxu0 %v422
    %436 = vmatprep.subr.bf16.mxu0 0
    %437 = vmatpush1.bf16.msra.mxu0 %v423
    %438 = vmatprep.subr.bf16.mxu0 0
    %439 = vmatpush1.bf16.msra.mxu0 %v424
    %440 = vmatprep.subr.bf16.mxu0 0
    %441 = vmatpush1.bf16.msra.mxu0 %v425
    %442 = vmatprep.subr.bf16.mxu0 0
    %443 = vmatpush1.bf16.msra.mxu0 %v426
    %444 = vmatprep.subr.bf16.mxu0 0
    %445 = vmatpush1.bf16.msra.mxu0 0
    %446 = vmatprep.subr.bf16.mxu0 0
    %447 = vmatpush1.bf16.msra.mxu0 0
    %448 = vmatprep.subr.bf16.mxu0 0
    %449 = vmatpush1.bf16.msra.mxu0 0
    %450 = vmatprep.subr.bf16.mxu0 0
    %451 = vmatpush1.bf16.msra.mxu0 0
    %452 = vmatprep.subr.bf16.mxu0 0
    %453 = vmatpush1.bf16.msra.mxu0 0
    %454 = vmatprep.subr.bf16.mxu0 0
    %455 = vmatpush1.bf16.msra.mxu0 0
    %456 = vmatprep.subr.bf16.mxu0 0
    %457 = vmatpush1.bf16.msra.mxu0 0
    %458 = vmatprep.subr.bf16.mxu0 0
    %459 = vmatpush1.bf16.msra.mxu0 0
    %460 = vmatprep.mubr.bf16.mxu0 0
    %461 = vmatmul.mubr.bf16.gmra.mrb[0].mxu0 %v427
    %v462 = vpop.f32.mrb[0].mxu0
    %v463 = vadd.f32 0.0, %v462
    %v464 = vpop.f32.mrb[0].mxu0
    %v465 = vpop.f32.mrb[0].mxu0
    %v466 = vpop.f32.mrb[0].mxu0
    %467 = vdwg.mxu0
    %v468 = vmax.f32 %v463, 0.0
    %s469 = scalar_lea.vmem [#allocation5], 384
    %v470 = vld [vmem:[%s469] sm:$0xff]
    %v471 = vld [vmem:[%s469 + $0x8] sm:$0xff]
    %v472 = vld [vmem:[%s469 + $0x10] sm:$0xff]
    %v473 = vld [vmem:[%s469 + $0x18] sm:$0xff]
    %v474 = vld [vmem:[%s469 + $0x20] sm:$0xff]
    %v475 = vld [vmem:[%s469 + $0x28] sm:$0xff]
    %v476 = vld [vmem:[%s469 + $0x30] sm:$0xff]
    %v477 = vld [vmem:[%s469 + $0x38] sm:$0xff]
    %v478 = vld [vmem:[%s469 + $0x40] sm:$0xff]
    %v479 = vld [vmem:[%s469 + $0x48] sm:$0xff]
    %v480 = vld [vmem:[%s469 + $0x50] sm:$0xff]
    %v481 = vld [vmem:[%s469 + $0x58] sm:$0xff]
    %v482 = vld [vmem:[%s469 + $0x60] sm:$0xff]
    %v483 = vld [vmem:[%s469 + $0x68] sm:$0xff]
    %v484 = vld [vmem:[%s469 + $0x70] sm:$0xff]
    %v485 = vld [vmem:[%s469 + $0x78] sm:$0xff]
    %s486 = scalar_lea.vmem [#allocation7], 384
    %v487 = vld [vmem:[%s486] sm:$0xff]
    %v488 = vld [vmem:[%s486 + $0x8] sm:$0xff]
    %v489 = vld [vmem:[%s486 + $0x10] sm:$0xff]
    %v490 = vld [vmem:[%s486 + $0x18] sm:$0xff]
    %v491 = vld [vmem:[%s486 + $0x20] sm:$0xff]
    %v492 = vld [vmem:[%s486 + $0x28] sm:$0xff]
    %v493 = vld [vmem:[%s486 + $0x30] sm:$0xff]
    %v494 = vld [vmem:[%s486 + $0x38] sm:$0xff]
    %v495 = vld [vmem:[%s486 + $0x40] sm:$0xff]
    %v496 = vld [vmem:[%s486 + $0x48] sm:$0xff]
    %v497 = vld [vmem:[%s486 + $0x50] sm:$0xff]
    %v498 = vld [vmem:[%s486 + $0x58] sm:$0xff]
    %v499 = vld [vmem:[%s486 + $0x60] sm:$0xff]
    %v500 = vld [vmem:[%s486 + $0x68] sm:$0xff]
    %v501 = vld [vmem:[%s486 + $0x70] sm:$0xff]
    %v502 = vld [vmem:[%s486 + $0x78] sm:$0xff]
    %s503 = scalar_lea.vmem [#allocation8], 384
    %v504 = vld [vmem:[%s503] sm:$0xff]
    %v505 = vld [vmem:[%s503 + $0x8] sm:$0xff]
    %v506 = vld [vmem:[%s503 + $0x10] sm:$0xff]
    %v507 = vld [vmem:[%s503 + $0x18] sm:$0xff]
    %v508 = vld [vmem:[%s503 + $0x20] sm:$0xff]
    %v509 = vld [vmem:[%s503 + $0x28] sm:$0xff]
    %v510 = vld [vmem:[%s503 + $0x30] sm:$0xff]
    %v511 = vld [vmem:[%s503 + $0x38] sm:$0xff]
    %v512 = vld [vmem:[%s503 + $0x40] sm:$0xff]
    %v513 = vld [vmem:[%s503 + $0x48] sm:$0xff]
    %v514 = vld [vmem:[%s503 + $0x50] sm:$0xff]
    %v515 = vld [vmem:[%s503 + $0x58] sm:$0xff]
    %v516 = vld [vmem:[%s503 + $0x60] sm:$0xff]
    %v517 = vld [vmem:[%s503 + $0x68] sm:$0xff]
    %v518 = vld [vmem:[%s503 + $0x70] sm:$0xff]
    %v519 = vld [vmem:[%s503 + $0x78] sm:$0xff]
    %v520 = vmul.f32 %v487, %v504
    %v521 = vmul.f32 %v488, %v505
    %v522 = vmul.f32 %v489, %v506
    %v523 = vmul.f32 %v490, %v507
    %v524 = vmul.f32 %v491, %v508
    %v525 = vmul.f32 %v492, %v509
    %v526 = vmul.f32 %v493, %v510
    %v527 = vmul.f32 %v494, %v511
    %v528 = vmul.f32 %v495, %v512
    %v529 = vmul.f32 %v496, %v513
    %v530 = vmul.f32 %v497, %v514
    %v531 = vmul.f32 %v498, %v515
    %v532 = vmul.f32 %v499, %v516
    %v533 = vmul.f32 %v500, %v517
    %v534 = vmul.f32 %v501, %v518
    %v535 = vmul.f32 %v502, %v519
    %v536 = vadd.f32 %v470, %v520
    %v537 = vadd.f32 %v471, %v521
    %v538 = vadd.f32 %v472, %v522
    %v539 = vadd.f32 %v473, %v523
    %v540 = vadd.f32 %v474, %v524
    %v541 = vadd.f32 %v475, %v525
    %v542 = vadd.f32 %v476, %v526
    %v543 = vadd.f32 %v477, %v527
    %v544 = vadd.f32 %v478, %v528
    %v545 = vadd.f32 %v479, %v529
    %v546 = vadd.f32 %v480, %v530
    %v547 = vadd.f32 %v481, %v531
    %v548 = vadd.f32 %v482, %v532
    %v549 = vadd.f32 %v483, %v533
    %v550 = vadd.f32 %v484, %v534
    %v551 = vadd.f32 %v485, %v535
    %v552 = vpack.c.bf16 %v537, %v536
    %v553 = vpack.c.bf16 %v539, %v538
    %v554 = vpack.c.bf16 %v541, %v540
    %v555 = vpack.c.bf16 %v543, %v542
    %v556 = vpack.c.bf16 %v545, %v544
    %v557 = vpack.c.bf16 %v547, %v546
    %v558 = vpack.c.bf16 %v549, %v548
    %v559 = vpack.c.bf16 %v551, %v550
    %v560 = vpack.c.bf16 %v468, %v468
    %561 = vmatprep.subr.bf16.mxu0 0
    %562 = vmatpush1.bf16.msra.mxu0 %v552
    %563 = vmatprep.subr.bf16.mxu0 0
    %564 = vmatpush1.bf16.msra.mxu0 %v553
    %565 = vmatprep.subr.bf16.mxu0 0
    %566 = vmatpush1.bf16.msra.mxu0 %v554
    %567 = vmatprep.subr.bf16.mxu0 0
    %568 = vmatpush1.bf16.msra.mxu0 %v555
    %569 = vmatprep.subr.bf16.mxu0 0
    %570 = vmatpush1.bf16.msra.mxu0 %v556
    %571 = vmatprep.subr.bf16.mxu0 0
    %572 = vmatpush1.bf16.msra.mxu0 %v557
    %573 = vmatprep.subr.bf16.mxu0 0
    %574 = vmatpush1.bf16.msra.mxu0 %v558
    %575 = vmatprep.subr.bf16.mxu0 0
    %576 = vmatpush1.bf16.msra.mxu0 %v559
    %577 = vmatprep.subr.bf16.mxu0 0
    %578 = vmatpush1.bf16.msra.mxu0 0
    %579 = vmatprep.subr.bf16.mxu0 0
    %580 = vmatpush1.bf16.msra.mxu0 0
    %581 = vmatprep.subr.bf16.mxu0 0
    %582 = vmatpush1.bf16.msra.mxu0 0
    %583 = vmatprep.subr.bf16.mxu0 0
    %584 = vmatpush1.bf16.msra.mxu0 0
    %585 = vmatprep.subr.bf16.mxu0 0
    %586 = vmatpush1.bf16.msra.mxu0 0
    %587 = vmatprep.subr.bf16.mxu0 0
    %588 = vmatpush1.bf16.msra.mxu0 0
    %589 = vmatprep.subr.bf16.mxu0 0
    %590 = vmatpush1.bf16.msra.mxu0 0
    %591 = vmatprep.subr.bf16.mxu0 0
    %592 = vmatpush1.bf16.msra.mxu0 0
    %593 = vmatprep.mubr.bf16.mxu0 0
    %594 = vmatmul.mubr.bf16.gmra.mrb[0].mxu0 %v560
    %v595 = vpop.f32.mrb[0].mxu0
    %v596 = vadd.f32 0.0, %v595
    %v597 = vpop.f32.mrb[0].mxu0
    %v598 = vpop.f32.mrb[0].mxu0
    %v599 = vpop.f32.mrb[0].mxu0
    %600 = vdwg.mxu0
    %v601 = vmax.f32 %v596, 0.0
    %s602 = scalar_lea.vmem [#allocation5], 512
    %v603 = vld [vmem:[%s602] sm:$0xff]
    %v604 = vld [vmem:[%s602 + $0x8] sm:$0xff]
    %v605 = vld [vmem:[%s602 + $0x10] sm:$0xff]
    %v606 = vld [vmem:[%s602 + $0x18] sm:$0xff]
    %v607 = vld [vmem:[%s602 + $0x20] sm:$0xff]
    %v608 = vld [vmem:[%s602 + $0x28] sm:$0xff]
    %v609 = vld [vmem:[%s602 + $0x30] sm:$0xff]
    %v610 = vld [vmem:[%s602 + $0x38] sm:$0xff]
    %v611 = vld [vmem:[%s602 + $0x40] sm:$0xff]
    %v612 = vld [vmem:[%s602 + $0x48] sm:$0xff]
    %v613 = vld [vmem:[%s602 + $0x50] sm:$0xff]
    %v614 = vld [vmem:[%s602 + $0x58] sm:$0xff]
    %v615 = vld [vmem:[%s602 + $0x60] sm:$0xff]
    %v616 = vld [vmem:[%s602 + $0x68] sm:$0xff]
    %v617 = vld [vmem:[%s602 + $0x70] sm:$0xff]
    %v618 = vld [vmem:[%s602 + $0x78] sm:$0xff]
    %s619 = scalar_lea.vmem [#allocation7], 512
    %v620 = vld [vmem:[%s619] sm:$0xff]
    %v621 = vld [vmem:[%s619 + $0x8] sm:$0xff]
    %v622 = vld [vmem:[%s619 + $0x10] sm:$0xff]
    %v623 = vld [vmem:[%s619 + $0x18] sm:$0xff]
    %v624 = vld [vmem:[%s619 + $0x20] sm:$0xff]
    %v625 = vld [vmem:[%s619 + $0x28] sm:$0xff]
    %v626 = vld [vmem:[%s619 + $0x30] sm:$0xff]
    %v627 = vld [vmem:[%s619 + $0x38] sm:$0xff]
    %v628 = vld [vmem:[%s619 + $0x40] sm:$0xff]
    %v629 = vld [vmem:[%s619 + $0x48] sm:$0xff]
    %v630 = vld [vmem:[%s619 + $0x50] sm:$0xff]
    %v631 = vld [vmem:[%s619 + $0x58] sm:$0xff]
    %v632 = vld [vmem:[%s619 + $0x60] sm:$0xff]
    %v633 = vld [vmem:[%s619 + $0x68] sm:$0xff]
    %v634 = vld [vmem:[%s619 + $0x70] sm:$0xff]
    %v635 = vld [vmem:[%s619 + $0x78] sm:$0xff]
    %s636 = scalar_lea.vmem [#allocation8], 512
    %v637 = vld [vmem:[%s636] sm:$0xff]
    %v638 = vld [vmem:[%s636 + $0x8] sm:$0xff]
    %v639 = vld [vmem:[%s636 + $0x10] sm:$0xff]
    %v640 = vld [vmem:[%s636 + $0x18] sm:$0xff]
    %v641 = vld [vmem:[%s636 + $0x20] sm:$0xff]
    %v642 = vld [vmem:[%s636 + $0x28] sm:$0xff]
    %v643 = vld [vmem:[%s636 + $0x30] sm:$0xff]
    %v644 = vld [vmem:[%s636 + $0x38] sm:$0xff]
    %v645 = vld [vmem:[%s636 + $0x40] sm:$0xff]
    %v646 = vld [vmem:[%s636 + $0x48] sm:$0xff]
    %v647 = vld [vmem:[%s636 + $0x50] sm:$0xff]
    %v648 = vld [vmem:[%s636 + $0x58] sm:$0xff]
    %v649 = vld [vmem:[%s636 + $0x60] sm:$0xff]
    %v650 = vld [vmem:[%s636 + $0x68] sm:$0xff]
    %v651 = vld [vmem:[%s636 + $0x70] sm:$0xff]
    %v652 = vld [vmem:[%s636 + $0x78] sm:$0xff]
    %v653 = vmul.f32 %v620, %v637
    %v654 = vmul.f32 %v621, %v638
    %v655 = vmul.f32 %v622, %v639
    %v656 = vmul.f32 %v623, %v640
    %v657 = vmul.f32 %v624, %v641
    %v658 = vmul.f32 %v625, %v642
    %v659 = vmul.f32 %v626, %v643
    %v660 = vmul.f32 %v627, %v644
    %v661 = vmul.f32 %v628, %v645
    %v662 = vmul.f32 %v629, %v646
    %v663 = vmul.f32 %v630, %v647
    %v664 = vmul.f32 %v631, %v648
    %v665 = vmul.f32 %v632, %v649
    %v666 = vmul.f32 %v633, %v650
    %v667 = vmul.f32 %v634, %v651
    %v668 = vmul.f32 %v635, %v652
    %v669 = vadd.f32 %v603, %v653
    %v670 = vadd.f32 %v604, %v654
    %v671 = vadd.f32 %v605, %v655
    %v672 = vadd.f32 %v606, %v656
    %v673 = vadd.f32 %v607, %v657
    %v674 = vadd.f32 %v608, %v658
    %v675 = vadd.f32 %v609, %v659
    %v676 = vadd.f32 %v610, %v660
    %v677 = vadd.f32 %v611, %v661
    %v678 = vadd.f32 %v612, %v662
    %v679 = vadd.f32 %v613, %v663
    %v680 = vadd.f32 %v614, %v664
    %v681 = vadd.f32 %v615, %v665
    %v682 = vadd.f32 %v616, %v666
    %v683 = vadd.f32 %v617, %v667
    %v684 = vadd.f32 %v618, %v668
    %v685 = vpack.c.bf16 %v670, %v669
    %v686 = vpack.c.bf16 %v672, %v671
    %v687 = vpack.c.bf16 %v674, %v673
    %v688 = vpack.c.bf16 %v676, %v675
    %v689 = vpack.c.bf16 %v678, %v677
    %v690 = vpack.c.bf16 %v680, %v679
    %v691 = vpack.c.bf16 %v682, %v681
    %v692 = vpack.c.bf16 %v684, %v683
    %v693 = vpack.c.bf16 %v601, %v601
    %694 = vmatprep.subr.bf16.mxu0 0
    %695 = vmatpush1.bf16.msra.mxu0 %v685
    %696 = vmatprep.subr.bf16.mxu0 0
    %697 = vmatpush1.bf16.msra.mxu0 %v686
    %698 = vmatprep.subr.bf16.mxu0 0
    %699 = vmatpush1.bf16.msra.mxu0 %v687
    %700 = vmatprep.subr.bf16.mxu0 0
    %701 = vmatpush1.bf16.msra.mxu0 %v688
    %702 = vmatprep.subr.bf16.mxu0 0
    %703 = vmatpush1.bf16.msra.mxu0 %v689
    %704 = vmatprep.subr.bf16.mxu0 0
    %705 = vmatpush1.bf16.msra.mxu0 %v690
    %706 = vmatprep.subr.bf16.mxu0 0
    %707 = vmatpush1.bf16.msra.mxu0 %v691
    %708 = vmatprep.subr.bf16.mxu0 0
    %709 = vmatpush1.bf16.msra.mxu0 %v692
    %710 = vmatprep.subr.bf16.mxu0 0
    %711 = vmatpush1.bf16.msra.mxu0 0
    %712 = vmatprep.subr.bf16.mxu0 0
    %713 = vmatpush1.bf16.msra.mxu0 0
    %714 = vmatprep.subr.bf16.mxu0 0
    %715 = vmatpush1.bf16.msra.mxu0 0
    %716 = vmatprep.subr.bf16.mxu0 0
    %717 = vmatpush1.bf16.msra.mxu0 0
    %718 = vmatprep.subr.bf16.mxu0 0
    %719 = vmatpush1.bf16.msra.mxu0 0
    %720 = vmatprep.subr.bf16.mxu0 0
    %721 = vmatpush1.bf16.msra.mxu0 0
    %722 = vmatprep.subr.bf16.mxu0 0
    %723 = vmatpush1.bf16.msra.mxu0 0
    %724 = vmatprep.subr.bf16.mxu0 0
    %725 = vmatpush1.bf16.msra.mxu0 0
    %726 = vmatprep.mubr.bf16.mxu0 0
    %727 = vmatmul.mubr.bf16.gmra.mrb[0].mxu0 %v693
    %v728 = vpop.f32.mrb[0].mxu0
    %v729 = vadd.f32 0.0, %v728
    %v730 = vpop.f32.mrb[0].mxu0
    %v731 = vpop.f32.mrb[0].mxu0
    %v732 = vpop.f32.mrb[0].mxu0
    %733 = vdwg.mxu0
    %v734 = vmax.f32 %v729, 0.0
    %s735 = scalar_lea.vmem [#allocation5], 640
    %v736 = vld [vmem:[%s735] sm:$0xff]
    %v737 = vld [vmem:[%s735 + $0x8] sm:$0xff]
    %v738 = vld [vmem:[%s735 + $0x10] sm:$0xff]
    %v739 = vld [vmem:[%s735 + $0x18] sm:$0xff]
    %v740 = vld [vmem:[%s735 + $0x20] sm:$0xff]
    %v741 = vld [vmem:[%s735 + $0x28] sm:$0xff]
    %v742 = vld [vmem:[%s735 + $0x30] sm:$0xff]
    %v743 = vld [vmem:[%s735 + $0x38] sm:$0xff]
    %v744 = vld [vmem:[%s735 + $0x40] sm:$0xff]
    %v745 = vld [vmem:[%s735 + $0x48] sm:$0xff]
    %v746 = vld [vmem:[%s735 + $0x50] sm:$0xff]
    %v747 = vld [vmem:[%s735 + $0x58] sm:$0xff]
    %v748 = vld [vmem:[%s735 + $0x60] sm:$0xff]
    %v749 = vld [vmem:[%s735 + $0x68] sm:$0xff]
    %v750 = vld [vmem:[%s735 + $0x70] sm:$0xff]
    %v751 = vld [vmem:[%s735 + $0x78] sm:$0xff]
    %s752 = scalar_lea.vmem [#allocation7], 640
    %v753 = vld [vmem:[%s752] sm:$0xff]
    %v754 = vld [vmem:[%s752 + $0x8] sm:$0xff]
    %v755 = vld [vmem:[%s752 + $0x10] sm:$0xff]
    %v756 = vld [vmem:[%s752 + $0x18] sm:$0xff]
    %v757 = vld [vmem:[%s752 + $0x20] sm:$0xff]
    %v758 = vld [vmem:[%s752 + $0x28] sm:$0xff]
    %v759 = vld [vmem:[%s752 + $0x30] sm:$0xff]
    %v760 = vld [vmem:[%s752 + $0x38] sm:$0xff]
    %v761 = vld [vmem:[%s752 + $0x40] sm:$0xff]
    %v762 = vld [vmem:[%s752 + $0x48] sm:$0xff]
    %v763 = vld [vmem:[%s752 + $0x50] sm:$0xff]
    %v764 = vld [vmem:[%s752 + $0x58] sm:$0xff]
    %v765 = vld [vmem:[%s752 + $0x60] sm:$0xff]
    %v766 = vld [vmem:[%s752 + $0x68] sm:$0xff]
    %v767 = vld [vmem:[%s752 + $0x70] sm:$0xff]
    %v768 = vld [vmem:[%s752 + $0x78] sm:$0xff]
    %s769 = scalar_lea.vmem [#allocation8], 640
    %v770 = vld [vmem:[%s769] sm:$0xff]
    %v771 = vld [vmem:[%s769 + $0x8] sm:$0xff]
    %v772 = vld [vmem:[%s769 + $0x10] sm:$0xff]
    %v773 = vld [vmem:[%s769 + $0x18] sm:$0xff]
    %v774 = vld [vmem:[%s769 + $0x20] sm:$0xff]
    %v775 = vld [vmem:[%s769 + $0x28] sm:$0xff]
    %v776 = vld [vmem:[%s769 + $0x30] sm:$0xff]
    %v777 = vld [vmem:[%s769 + $0x38] sm:$0xff]
    %v778 = vld [vmem:[%s769 + $0x40] sm:$0xff]
    %v779 = vld [vmem:[%s769 + $0x48] sm:$0xff]
    %v780 = vld [vmem:[%s769 + $0x50] sm:$0xff]
    %v781 = vld [vmem:[%s769 + $0x58] sm:$0xff]
    %v782 = vld [vmem:[%s769 + $0x60] sm:$0xff]
    %v783 = vld [vmem:[%s769 + $0x68] sm:$0xff]
    %v784 = vld [vmem:[%s769 + $0x70] sm:$0xff]
    %v785 = vld [vmem:[%s769 + $0x78] sm:$0xff]
    %v786 = vmul.f32 %v753, %v770
    %v787 = vmul.f32 %v754, %v771
    %v788 = vmul.f32 %v755, %v772
    %v789 = vmul.f32 %v756, %v773
    %v790 = vmul.f32 %v757, %v774
    %v791 = vmul.f32 %v758, %v775
    %v792 = vmul.f32 %v759, %v776
    %v793 = vmul.f32 %v760, %v777
    %v794 = vmul.f32 %v761, %v778
    %v795 = vmul.f32 %v762, %v779
    %v796 = vmul.f32 %v763, %v780
    %v797 = vmul.f32 %v764, %v781
    %v798 = vmul.f32 %v765, %v782
    %v799 = vmul.f32 %v766, %v783
    %v800 = vmul.f32 %v767, %v784
    %v801 = vmul.f32 %v768, %v785
    %v802 = vadd.f32 %v736, %v786
    %v803 = vadd.f32 %v737, %v787
    %v804 = vadd.f32 %v738, %v788
    %v805 = vadd.f32 %v739, %v789
    %v806 = vadd.f32 %v740, %v790
    %v807 = vadd.f32 %v741, %v791
    %v808 = vadd.f32 %v742, %v792
    %v809 = vadd.f32 %v743, %v793
    %v810 = vadd.f32 %v744, %v794
    %v811 = vadd.f32 %v745, %v795
    %v812 = vadd.f32 %v746, %v796
    %v813 = vadd.f32 %v747, %v797
    %v814 = vadd.f32 %v748, %v798
    %v815 = vadd.f32 %v749, %v799
    %v816 = vadd.f32 %v750, %v800
    %v817 = vadd.f32 %v751, %v801
    %v818 = vpack.c.bf16 %v803, %v802
    %v819 = vpack.c.bf16 %v805, %v804
    %v820 = vpack.c.bf16 %v807, %v806
    %v821 = vpack.c.bf16 %v809, %v808
    %v822 = vpack.c.bf16 %v811, %v810
    %v823 = vpack.c.bf16 %v813, %v812
    %v824 = vpack.c.bf16 %v815, %v814
    %v825 = vpack.c.bf16 %v817, %v816
    %v826 = vpack.c.bf16 %v734, %v734
    %827 = vmatprep.subr.bf16.mxu0 0
    %828 = vmatpush1.bf16.msra.mxu0 %v818
    %829 = vmatprep.subr.bf16.mxu0 0
    %830 = vmatpush1.bf16.msra.mxu0 %v819
    %831 = vmatprep.subr.bf16.mxu0 0
    %832 = vmatpush1.bf16.msra.mxu0 %v820
    %833 = vmatprep.subr.bf16.mxu0 0
    %834 = vmatpush1.bf16.msra.mxu0 %v821
    %835 = vmatprep.subr.bf16.mxu0 0
    %836 = vmatpush1.bf16.msra.mxu0 %v822
    %837 = vmatprep.subr.bf16.mxu0 0
    %838 = vmatpush1.bf16.msra.mxu0 %v823
    %839 = vmatprep.subr.bf16.mxu0 0
    %840 = vmatpush1.bf16.msra.mxu0 %v824
    %841 = vmatprep.subr.bf16.mxu0 0
    %842 = vmatpush1.bf16.msra.mxu0 %v825
    %843 = vmatprep.subr.bf16.mxu0 0
    %844 = vmatpush1.bf16.msra.mxu0 0
    %845 = vmatprep.subr.bf16.mxu0 0
    %846 = vmatpush1.bf16.msra.mxu0 0
    %847 = vmatprep.subr.bf16.mxu0 0
    %848 = vmatpush1.bf16.msra.mxu0 0
    %849 = vmatprep.subr.bf16.mxu0 0
    %850 = vmatpush1.bf16.msra.mxu0 0
    %851 = vmatprep.subr.bf16.mxu0 0
    %852 = vmatpush1.bf16.msra.mxu0 0
    %853 = vmatprep.subr.bf16.mxu0 0
    %854 = vmatpush1.bf16.msra.mxu0 0
    %855 = vmatprep.subr.bf16.mxu0 0
    %856 = vmatpush1.bf16.msra.mxu0 0
    %857 = vmatprep.subr.bf16.mxu0 0
    %858 = vmatpush1.bf16.msra.mxu0 0
    %859 = vmatprep.mubr.bf16.mxu0 0
    %860 = vmatmul.mubr.bf16.gmra.mrb[0].mxu0 %v826
    %v861 = vpop.f32.mrb[0].mxu0
    %v862 = vadd.f32 0.0, %v861
    %v863 = vpop.f32.mrb[0].mxu0
    %v864 = vpop.f32.mrb[0].mxu0
    %v865 = vpop.f32.mrb[0].mxu0
    %866 = vdwg.mxu0
    %v867 = vlaneseq
    %v868 = vand.u32 %v867, 127
    %vm869 = vcmp.lt.s32.totalorder %v868, 3
    %v870 = vsel %vm869, %v862, -1e+30
    %871 = vmax.xlane.f32.xlu0 %v870
    %v872 = vpop.xlane.xlu0 %871
    %v873 = vsub.f32 %v870, %v872
    %v874 = vmul.f32 %v873, 1.442695
    %v875 = vpow.pop %v874
    %876 = vadd.xlane.f32.xlu0 %v875
    %v877 = vpop.xlane.xlu0 %876
    %v878 = vlog2.pop %v877
    %v879 = vmul.f32 %v878, 0.6931472
    %v880 = vsub.f32 %v873, %v879
    %881 = vst [vmem:[#allocation10] sm:$0xff] %v880
    // Predicated region
    $region34: #{tpu_custom_call.1} parent=1 // pred_check
      _
    $region35: #{tpu_custom_call.1} parent=1 // pred_check_branch
      %883 = sbr.rel (0) target = $region37
    $region36: #{tpu_custom_call.1} parent=1 // pred_region
      %s885 = ssub.s32 128, 128
      %886 = vsyncadd [#allocation4], %s885
      %s888 = sshll.u32 [#allocation10], 4
      %s889 = int_to_ptr.vmem [resolvable:$true] %s888
      %891 = dma.vmem_to_hbm [thread:$0]  %s889, 128, %s4, [#allocation4]
    $region37: #{tpu_custom_call.1} parent=1 // pred_fallthru
      _
    // Predicated region
    $region38: #{tpu_custom_call.1} parent=1 // pred_check
      _
    $region39: #{tpu_custom_call.1} parent=1 // pred_check_branch
      %893 = sbr.rel (0) target = $region41
    $region40: #{tpu_custom_call.1} parent=1 // pred_region
      %894 = dma.done [#allocation4], 128
    $region41: #{tpu_custom_call.1} parent=1 // pred_fallthru
      _
    %895 = vsyncpa [#allocation3], 1
    %896 = vsyncpa [#allocation6], 1
    %897 = vsyncpa [#allocation9], 1
    %898 = vsyncpa [#allocation4], 1

</llo_original>
